<compile_context>
chip_gen: v5e
topology: v5e:2x2
jax: 0.10.0
libtpu: 0.0.40
codegen_flags: <defaults>
</compile_context>

<pallas_src>
import functools

import jax
import jax.numpy as jnp
from jax.experimental import pallas as pl
from jax.experimental.pallas import tpu as pltpu

_SUB = 8                # sublanes per f32 vreg tile
_LANE = 128             # lanes per vreg tile
_MAX_BLOCK_ROWS = 2048  # 2048 x 128 f32 block = 1 MiB per input pipeline buffer


def _dice_bce_kernel(x_ref, t_ref, part_ref, *, n_total, block_rows,
                     blocks_total, blocks_per_core):
    """Accumulates per-core [intersection, sum(p), sum(t), sum(bce)] slabs.

    part_ref: (1, 4, 8, 128) f32 output block, resident across the inner
    (reduction) grid axis and owned by one core along the parallel axis.
    """
    c = pl.program_id(0)          # core (parallel) axis
    i = pl.program_id(1)          # block (reduction) axis
    b = c * blocks_per_core + i   # global block id (input index_map clamps it)

    @pl.when(i == 0)
    def _init():
        part_ref[...] = jnp.zeros_like(part_ref)

    x = x_ref[...].astype(jnp.float32)
    t = t_ref[...].astype(jnp.float32)

    # Numerically-stable shared-softplus formulation (one exp, one log1p).
    e = jnp.exp(-jnp.abs(x))                          # exp(-|x|)
    sp = jnp.log1p(e) + jnp.maximum(-x, 0.0)          # softplus(-x)
    log_p = jnp.maximum(-sp, -100.0)                  # log(sigmoid(x)), clamped
    log_1mp = jnp.maximum(-(x + sp), -100.0)          # log(1-sigmoid(x)), clamped
    # sigmoid(x): reuse e; EUP approx reciprocal instead of a VALU divide.
    p = jnp.where(x >= 0.0, 1.0, e) * pl.reciprocal(1.0 + e, approx=True)
    bce = -(t * log_p + (1.0 - t) * log_1mp)

    def _fold(v):  # (block_rows, 128) -> (8, 128) via vreg adds only
        return jnp.sum(v.reshape(-1, _SUB, _LANE), axis=0)

    needs_mask = b >= blocks_total - 1  # only the last real block (or the
                                        # fully-OOB duplicate block) can carry
                                        # wrapper padding / ragged garbage.

    @pl.when(jnp.logical_not(needs_mask))
    def _accumulate_unmasked():
        part_ref[0, 0] += _fold(p * t)   # intersection
        part_ref[0, 1] += _fold(p)       # sum(sigmoid(x))
        part_ref[0, 2] += _fold(t)       # sum(targets)
        part_ref[0, 3] += _fold(bce)     # sum(bce)

    @pl.when(needs_mask)
    def _accumulate_masked():
        row_ids = jax.lax.broadcasted_iota(jnp.int32, x.shape, 0) + b * block_rows
        lane_ids = jax.lax.broadcasted_iota(jnp.int32, x.shape, 1)
        mask = (row_ids * _LANE + lane_ids) < n_total
        zero = jnp.zeros_like(x)
        pm = jnp.where(mask, p, zero)
        tm = jnp.where(mask, t, zero)
        bm = jnp.where(mask, bce, zero)
        part_ref[0, 0] += _fold(pm * tm)
        part_ref[0, 1] += _fold(pm)
        part_ref[0, 2] += _fold(tm)
        part_ref[0, 3] += _fold(bm)


def dice_bce_loss(inputs, targets, smooth=1.0):
    """DiceBCELoss forward. `inputs` are raw logits, `targets` are {0,1}."""
    n_total = int(inputs.size)
    x = inputs.reshape(-1)
    t = targets.reshape(-1)

    # Sublane multiple depends on packing: 8 rows for 32-bit dtypes, 16 for
    # 16-bit, 32 for 8-bit (avoids packed-layout edge cases on ragged tails).
    def _row_mult(dt):
        return _SUB * max(1, 4 // jnp.dtype(dt).itemsize)

    row_mult = max(_row_mult(x.dtype), _row_mult(t.dtype))
    tile = row_mult * _LANE
    pad = (-n_total) % tile
    if pad:  # only when the flat length is not already tile-aligned
        x = jnp.pad(x, (0, pad))
        t = jnp.pad(t, (0, pad))

    rows = (n_total + pad) // _LANE            # multiple of row_mult (>= 8)
    x2 = x.reshape(rows, _LANE)
    t2 = t.reshape(rows, _LANE)

    block_rows = min(_MAX_BLOCK_ROWS, rows)    # multiple of 8, VMEM-friendly
    blocks_total = pl.cdiv(rows, block_rows)
    num_cores = 2  # TODO(synk): query TC count; a size-2 parallel axis is
                   # harmless (sequential) on single-TensorCore chips.
    blocks_per_core = pl.cdiv(blocks_total, num_cores)

    kernel = functools.partial(
        _dice_bce_kernel,
        n_total=n_total,
        block_rows=block_rows,
        blocks_total=blocks_total,
        blocks_per_core=blocks_per_core,
    )

    def in_map(c, i):
        # Clamp so a possible duplicate block (odd block count) never DMAs out
        # of bounds; the kernel fully masks its contribution.
        return (jnp.minimum(c * blocks_per_core + i, blocks_total - 1), 0)

    parts = pl.pallas_call(
        kernel,
        out_shape=jax.ShapeDtypeStruct((num_cores, 4, _SUB, _LANE), jnp.float32),
        grid_spec=pltpu.PrefetchScalarGridSpec(
            num_scalar_prefetch=0,
            grid=(num_cores, blocks_per_core),
            in_specs=[
                pl.BlockSpec((block_rows, _LANE), in_map),
                pl.BlockSpec((block_rows, _LANE), in_map),
            ],
            # Same block across the inner axis -> resident accumulator, one
            # (1,4,8,128) slab per core along the parallel axis.
            out_specs=pl.BlockSpec((1, 4, _SUB, _LANE),
                                   lambda c, i: (c, 0, 0, 0)),
        ),
        compiler_params=pltpu.CompilerParams(
            dimension_semantics=("parallel", "arbitrary"),
            vmem_limit_bytes=32 * 1024 * 1024,
        ),
    )(x2, t2)

    sums = jnp.sum(parts, axis=(0, 2, 3))      # tiny (2,4,8,128) reduce in XLA
    intersection, p_sum, t_sum, bce_sum = sums[0], sums[1], sums[2], sums[3]
    smooth = jnp.float32(smooth)
    dice_loss = 1.0 - (2.0 * intersection + smooth) / (p_sum + t_sum + smooth)
    return bce_sum / jnp.float32(n_total) + dice_loss


if __name__ == "__main__":
    key = jax.random.PRNGKey(0)
    k1, k2 = jax.random.split(key)

    # Small NCHW shapes: batch=2, channels=4, spatial=16x16.
    x = jax.random.normal(k1, (2, 4, 16, 16), dtype=jnp.float32)
    targets = jax.random.bernoulli(k2, p=0.5, shape=(2, 4, 16, 16)).astype(
        jnp.float32)

    loss = dice_bce_loss(x, targets, smooth=1.0)
    jax.block_until_ready(loss)

    # Pure-JAX reference (mirrors the PyTorch module) for a sanity check.
    def _ref(inp, tgt, smooth=1.0):
        p = jax.nn.sigmoid(inp).reshape(-1)
        tt = tgt.reshape(-1)
        inter = jnp.sum(p * tt)
        dice = 1.0 - (2.0 * inter + smooth) / (jnp.sum(p) + jnp.sum(tt) + smooth)
        logp = jnp.maximum(jnp.log(p), -100.0)
        log1mp = jnp.maximum(jnp.log(1.0 - p), -100.0)
        bce = jnp.mean(-(tt * logp + (1.0 - tt) * log1mp))
        return bce + dice

    ref = _ref(x, targets, 1.0)
    # Tolerance loosened slightly vs the divide-based version because sigmoid
    # now uses the EUP approximate reciprocal (affects the dice sums only).
    assert jnp.abs(loss - ref) < 5e-3, (loss, ref)
    print("KERNEL_OK")
</pallas_src>

<mosaic_0001>
module attributes {stable_mosaic.version = 11 : i64} {
  func.func @_dice_bce_kernel(%arg0: i32, %arg1: i32, %arg2: memref<16x128xf32, #tpu.memory_space<vmem>>, %arg3: memref<16x128xf32, #tpu.memory_space<vmem>>, %arg4: memref<1x4x8x128xf32, #tpu.memory_space<vmem>>) attributes {dimension_semantics = [#tpu.dimension_semantics<parallel>, #tpu.dimension_semantics<arbitrary>], iteration_bounds = array<i64: 2, 1>, scalar_prefetch = 0 : i64, scratch_operands = 0 : i64, tpu.core_type = #tpu.core_type<tc>, window_params = [{transform_indices = @transform_0, window_bounds = array<i64: 16, 128>}, {transform_indices = @transform_1, window_bounds = array<i64: 16, 128>}, {transform_indices = @transform_2, window_bounds = array<i64: 1, 4, 8, 128>}]} {
    %c1_i32 = arith.constant 1 : i32
    %0 = arith.muli %arg0, %c1_i32 : i32
    %1 = arith.addi %0, %arg1 : i32
    %c0_i32 = arith.constant 0 : i32
    %2 = arith.cmpi eq, %arg1, %c0_i32 : i32
    %3 = arith.extui %2 : i1 to i32
    %c0_i32_0 = arith.constant 0 : i32
    %4 = arith.cmpi ne, %3, %c0_i32_0 : i32
    scf.if %4 {
      %cst_18 = arith.constant 0.000000e+00 : f32
      %47 = vector.broadcast %cst_18 : f32 to vector<1x4x8x128xf32>
      %c0_19 = arith.constant 0 : index
      %c0_20 = arith.constant 0 : index
      %c0_21 = arith.constant 0 : index
      %c0_22 = arith.constant 0 : index
      %48 = vector.load %arg4[%c0_19, %c0_20, %c0_21, %c0_22] : memref<1x4x8x128xf32, #tpu.memory_space<vmem>>, vector<1x4x8x128xf32>
      tpu.vector_store %arg4[%c0_19, %c0_20, %c0_21, %c0_22], %47 {strides = array<i32>} : memref<1x4x8x128xf32, #tpu.memory_space<vmem>>, vector<1x4x8x128xf32>,
    } else {
    }
    %c0 = arith.constant 0 : index
    %c0_1 = arith.constant 0 : index
    %5 = vector.load %arg2[%c0, %c0_1] : memref<16x128xf32, #tpu.memory_space<vmem>>, vector<16x128xf32>
    %c0_2 = arith.constant 0 : index
    %c0_3 = arith.constant 0 : index
    %6 = vector.load %arg3[%c0_2, %c0_3] : memref<16x128xf32, #tpu.memory_space<vmem>>, vector<16x128xf32>
    %7 = math.absf %5 : vector<16x128xf32>
    %cst = arith.constant 0.000000e+00 : f32
    %8 = vector.broadcast %cst : f32 to vector<16x128xf32>
    %9 = arith.subf %8, %7 : vector<16x128xf32>
    %10 = math.exp %9 : vector<16x128xf32>
    %11 = math.log1p %10 : vector<16x128xf32>
    %cst_4 = arith.constant 0.000000e+00 : f32
    %12 = vector.broadcast %cst_4 : f32 to vector<16x128xf32>
    %13 = arith.subf %12, %5 : vector<16x128xf32>
    %cst_5 = arith.constant 0.000000e+00 : f32
    %14 = vector.broadcast %cst_5 : f32 to vector<16x128xf32>
    %15 = arith.maximumf %13, %14 : vector<16x128xf32>
    %16 = arith.addf %11, %15 : vector<16x128xf32>
    %cst_6 = arith.constant 0.000000e+00 : f32
    %17 = vector.broadcast %cst_6 : f32 to vector<16x128xf32>
    %18 = arith.subf %17, %16 : vector<16x128xf32>
    %cst_7 = arith.constant -1.000000e+02 : f32
    %19 = vector.broadcast %cst_7 : f32 to vector<16x128xf32>
    %20 = arith.maximumf %18, %19 : vector<16x128xf32>
    %21 = arith.addf %5, %16 : vector<16x128xf32>
    %cst_8 = arith.constant 0.000000e+00 : f32
    %22 = vector.broadcast %cst_8 : f32 to vector<16x128xf32>
    %23 = arith.subf %22, %21 : vector<16x128xf32>
    %cst_9 = arith.constant -1.000000e+02 : f32
    %24 = vector.broadcast %cst_9 : f32 to vector<16x128xf32>
    %25 = arith.maximumf %23, %24 : vector<16x128xf32>
    %cst_10 = arith.constant 0.000000e+00 : f32
    %26 = vector.broadcast %cst_10 : f32 to vector<16x128xf32>
    %27 = arith.cmpf oge, %5, %26 : vector<16x128xf32>
    %cst_11 = arith.constant 1.000000e+00 : f32
    %28 = vector.broadcast %cst_11 : f32 to vector<16x128xf32>
    %29 = arith.select %27, %28, %10 : vector<16x128xi1>, vector<16x128xf32>
    %cst_12 = arith.constant 1.000000e+00 : f32
    %30 = vector.broadcast %cst_12 : f32 to vector<16x128xf32>
    %31 = arith.addf %30, %10 : vector<16x128xf32>
    %32 = tpu.reciprocal %31 {approx = true} : vector<16x128xf32> -> vector<16x128xf32>
    %33 = arith.mulf %29, %32 : vector<16x128xf32>
    %34 = arith.mulf %6, %20 : vector<16x128xf32>
    %cst_13 = arith.constant 1.000000e+00 : f32
    %35 = vector.broadcast %cst_13 : f32 to vector<16x128xf32>
    %36 = arith.subf %35, %6 : vector<16x128xf32>
    %37 = arith.mulf %36, %25 : vector<16x128xf32>
    %38 = arith.addf %34, %37 : vector<16x128xf32>
    %cst_14 = arith.constant 0.000000e+00 : f32
    %39 = vector.broadcast %cst_14 : f32 to vector<16x128xf32>
    %40 = arith.subf %39, %38 : vector<16x128xf32>
    %c0_i32_15 = arith.constant 0 : i32
    %41 = arith.cmpi sge, %1, %c0_i32_15 : i32
    %true = arith.constant true
    %42 = arith.xori %41, %true : i1
    %43 = arith.extui %42 : i1 to i32
    %c0_i32_16 = arith.constant 0 : i32
    %44 = arith.cmpi ne, %43, %c0_i32_16 : i32
    scf.if %44 {
      %c0_18 = arith.constant 0 : index
      %c0_19 = arith.constant 0 : index
      %c0_20 = arith.constant 0 : index
      %c0_21 = arith.constant 0 : index
      %47 = vector.load %arg4[%c0_18, %c0_19, %c0_20, %c0_21] : memref<1x4x8x128xf32, #tpu.memory_space<vmem>>, vector<1x1x8x128xf32>
      %48 = vector.shape_cast %47 : vector<1x1x8x128xf32> to vector<8x128xf32>
      %49 = arith.mulf %33, %6 : vector<16x128xf32>
      %50 = vector.shape_cast %49 : vector<16x128xf32> to vector<2x8x128xf32>
      %cst_22 = arith.constant dense<0.000000e+00> : vector<8x128xf32>
      %51 = vector.multi_reduction <add>, %50, %cst_22 [0] : vector<2x8x128xf32> to vector<8x128xf32>
      %52 = arith.addf %48, %51 : vector<8x128xf32>
      %c0_23 = arith.constant 0 : index
      %c0_24 = arith.constant 0 : index
      %c0_25 = arith.constant 0 : index
      %c0_26 = arith.constant 0 : index
      %53 = vector.load %arg4[%c0_23, %c0_24, %c0_25, %c0_26] : memref<1x4x8x128xf32, #tpu.memory_space<vmem>>, vector<1x1x8x128xf32>
      %54 = vector.shape_cast %53 : vector<1x1x8x128xf32> to vector<8x128xf32>
      %55 = vector.shape_cast %52 : vector<8x128xf32> to vector<1x1x8x128xf32>
      tpu.vector_store %arg4[%c0_23, %c0_24, %c0_25, %c0_26], %55 {strides = array<i32>} : memref<1x4x8x128xf32, #tpu.memory_space<vmem>>, vector<1x1x8x128xf32>,
      %c0_27 = arith.constant 0 : index
      %c1 = arith.constant 1 : index
      %c0_28 = arith.constant 0 : index
      %c0_29 = arith.constant 0 : index
      %56 = vector.load %arg4[%c0_27, %c1, %c0_28, %c0_29] : memref<1x4x8x128xf32, #tpu.memory_space<vmem>>, vector<1x1x8x128xf32>
      %57 = vector.shape_cast %56 : vector<1x1x8x128xf32> to vector<8x128xf32>
      %58 = vector.shape_cast %33 : vector<16x128xf32> to vector<2x8x128xf32>
      %cst_30 = arith.constant dense<0.000000e+00> : vector<8x128xf32>
      %59 = vector.multi_reduction <add>, %58, %cst_30 [0] : vector<2x8x128xf32> to vector<8x128xf32>
      %60 = arith.addf %57, %59 : vector<8x128xf32>
      %c0_31 = arith.constant 0 : index
      %c1_32 = arith.constant 1 : index
      %c0_33 = arith.constant 0 : index
      %c0_34 = arith.constant 0 : index
      %61 = vector.load %arg4[%c0_31, %c1_32, %c0_33, %c0_34] : memref<1x4x8x128xf32, #tpu.memory_space<vmem>>, vector<1x1x8x128xf32>
      %62 = vector.shape_cast %61 : vector<1x1x8x128xf32> to vector<8x128xf32>
      %63 = vector.shape_cast %60 : vector<8x128xf32> to vector<1x1x8x128xf32>
      tpu.vector_store %arg4[%c0_31, %c1_32, %c0_33, %c0_34], %63 {strides = array<i32>} : memref<1x4x8x128xf32, #tpu.memory_space<vmem>>, vector<1x1x8x128xf32>,
      %c0_35 = arith.constant 0 : index
      %c2 = arith.constant 2 : index
      %c0_36 = arith.constant 0 : index
      %c0_37 = arith.constant 0 : index
      %64 = vector.load %arg4[%c0_35, %c2, %c0_36, %c0_37] : memref<1x4x8x128xf32, #tpu.memory_space<vmem>>, vector<1x1x8x128xf32>
      %65 = vector.shape_cast %64 : vector<1x1x8x128xf32> to vector<8x128xf32>
      %66 = vector.shape_cast %6 : vector<16x128xf32> to vector<2x8x128xf32>
      %cst_38 = arith.constant dense<0.000000e+00> : vector<8x128xf32>
      %67 = vector.multi_reduction <add>, %66, %cst_38 [0] : vector<2x8x128xf32> to vector<8x128xf32>
      %68 = arith.addf %65, %67 : vector<8x128xf32>
      %c0_39 = arith.constant 0 : index
      %c2_40 = arith.constant 2 : index
      %c0_41 = arith.constant 0 : index
      %c0_42 = arith.constant 0 : index
      %69 = vector.load %arg4[%c0_39, %c2_40, %c0_41, %c0_42] : memref<1x4x8x128xf32, #tpu.memory_space<vmem>>, vector<1x1x8x128xf32>
      %70 = vector.shape_cast %69 : vector<1x1x8x128xf32> to vector<8x128xf32>
      %71 = vector.shape_cast %68 : vector<8x128xf32> to vector<1x1x8x128xf32>
      tpu.vector_store %arg4[%c0_39, %c2_40, %c0_41, %c0_42], %71 {strides = array<i32>} : memref<1x4x8x128xf32, #tpu.memory_space<vmem>>, vector<1x1x8x128xf32>,
      %c0_43 = arith.constant 0 : index
      %c3 = arith.constant 3 : index
      %c0_44 = arith.constant 0 : index
      %c0_45 = arith.constant 0 : index
      %72 = vector.load %arg4[%c0_43, %c3, %c0_44, %c0_45] : memref<1x4x8x128xf32, #tpu.memory_space<vmem>>, vector<1x1x8x128xf32>
      %73 = vector.shape_cast %72 : vector<1x1x8x128xf32> to vector<8x128xf32>
      %74 = vector.shape_cast %40 : vector<16x128xf32> to vector<2x8x128xf32>
      %cst_46 = arith.constant dense<0.000000e+00> : vector<8x128xf32>
      %75 = vector.multi_reduction <add>, %74, %cst_46 [0] : vector<2x8x128xf32> to vector<8x128xf32>
      %76 = arith.addf %73, %75 : vector<8x128xf32>
      %c0_47 = arith.constant 0 : index
      %c3_48 = arith.constant 3 : index
      %c0_49 = arith.constant 0 : index
      %c0_50 = arith.constant 0 : index
      %77 = vector.load %arg4[%c0_47, %c3_48, %c0_49, %c0_50] : memref<1x4x8x128xf32, #tpu.memory_space<vmem>>, vector<1x1x8x128xf32>
      %78 = vector.shape_cast %77 : vector<1x1x8x128xf32> to vector<8x128xf32>
      %79 = vector.shape_cast %76 : vector<8x128xf32> to vector<1x1x8x128xf32>
      tpu.vector_store %arg4[%c0_47, %c3_48, %c0_49, %c0_50], %79 {strides = array<i32>} : memref<1x4x8x128xf32, #tpu.memory_space<vmem>>, vector<1x1x8x128xf32>,
    } else {
    }
    %45 = arith.extui %41 : i1 to i32
    %c0_i32_17 = arith.constant 0 : i32
    %46 = arith.cmpi ne, %45, %c0_i32_17 : i32
    scf.if %46 {
      %47 = tpu.iota {dimensions = array<i32: 0>} : vector<16x128xi32>
      %c16_i32 = arith.constant 16 : i32
      %48 = arith.muli %1, %c16_i32 : i32
      %49 = vector.broadcast %48 : i32 to vector<16x128xi32>
      %50 = arith.addi %47, %49 : vector<16x128xi32>
      %51 = tpu.iota {dimensions = array<i32: 1>} : vector<16x128xi32>
      %c128_i32 = arith.constant 128 : i32
      %52 = vector.broadcast %c128_i32 : i32 to vector<16x128xi32>
      %53 = arith.muli %50, %52 : vector<16x128xi32>
      %54 = arith.addi %53, %51 : vector<16x128xi32>
      %c2048_i32 = arith.constant 2048 : i32
      %55 = vector.broadcast %c2048_i32 : i32 to vector<16x128xi32>
      %56 = arith.cmpi slt, %54, %55 : vector<16x128xi32>
      %cst_18 = arith.constant 0.000000e+00 : f32
      %57 = vector.broadcast %cst_18 : f32 to vector<16x128xf32>
      %58 = arith.select %56, %33, %57 : vector<16x128xi1>, vector<16x128xf32>
      %59 = arith.select %56, %6, %57 : vector<16x128xi1>, vector<16x128xf32>
      %60 = arith.select %56, %40, %57 : vector<16x128xi1>, vector<16x128xf32>
      %c0_19 = arith.constant 0 : index
      %c0_20 = arith.constant 0 : index
      %c0_21 = arith.constant 0 : index
      %c0_22 = arith.constant 0 : index
      %61 = vector.load %arg4[%c0_19, %c0_20, %c0_21, %c0_22] : memref<1x4x8x128xf32, #tpu.memory_space<vmem>>, vector<1x1x8x128xf32>
      %62 = vector.shape_cast %61 : vector<1x1x8x128xf32> to vector<8x128xf32>
      %63 = arith.mulf %58, %59 : vector<16x128xf32>
      %64 = vector.shape_cast %63 : vector<16x128xf32> to vector<2x8x128xf32>
      %cst_23 = arith.constant dense<0.000000e+00> : vector<8x128xf32>
      %65 = vector.multi_reduction <add>, %64, %cst_23 [0] : vector<2x8x128xf32> to vector<8x128xf32>
      %66 = arith.addf %62, %65 : vector<8x128xf32>
      %c0_24 = arith.constant 0 : index
      %c0_25 = arith.constant 0 : index
      %c0_26 = arith.constant 0 : index
      %c0_27 = arith.constant 0 : index
      %67 = vector.load %arg4[%c0_24, %c0_25, %c0_26, %c0_27] : memref<1x4x8x128xf32, #tpu.memory_space<vmem>>, vector<1x1x8x128xf32>
      %68 = vector.shape_cast %67 : vector<1x1x8x128xf32> to vector<8x128xf32>
      %69 = vector.shape_cast %66 : vector<8x128xf32> to vector<1x1x8x128xf32>
      tpu.vector_store %arg4[%c0_24, %c0_25, %c0_26, %c0_27], %69 {strides = array<i32>} : memref<1x4x8x128xf32, #tpu.memory_space<vmem>>, vector<1x1x8x128xf32>,
      %c0_28 = arith.constant 0 : index
      %c1 = arith.constant 1 : index
      %c0_29 = arith.constant 0 : index
      %c0_30 = arith.constant 0 : index
      %70 = vector.load %arg4[%c0_28, %c1, %c0_29, %c0_30] : memref<1x4x8x128xf32, #tpu.memory_space<vmem>>, vector<1x1x8x128xf32>
      %71 = vector.shape_cast %70 : vector<1x1x8x128xf32> to vector<8x128xf32>
      %72 = vector.shape_cast %58 : vector<16x128xf32> to vector<2x8x128xf32>
      %cst_31 = arith.constant dense<0.000000e+00> : vector<8x128xf32>
      %73 = vector.multi_reduction <add>, %72, %cst_31 [0] : vector<2x8x128xf32> to vector<8x128xf32>
      %74 = arith.addf %71, %73 : vector<8x128xf32>
      %c0_32 = arith.constant 0 : index
      %c1_33 = arith.constant 1 : index
      %c0_34 = arith.constant 0 : index
      %c0_35 = arith.constant 0 : index
      %75 = vector.load %arg4[%c0_32, %c1_33, %c0_34, %c0_35] : memref<1x4x8x128xf32, #tpu.memory_space<vmem>>, vector<1x1x8x128xf32>
      %76 = vector.shape_cast %75 : vector<1x1x8x128xf32> to vector<8x128xf32>
      %77 = vector.shape_cast %74 : vector<8x128xf32> to vector<1x1x8x128xf32>
      tpu.vector_store %arg4[%c0_32, %c1_33, %c0_34, %c0_35], %77 {strides = array<i32>} : memref<1x4x8x128xf32, #tpu.memory_space<vmem>>, vector<1x1x8x128xf32>,
      %c0_36 = arith.constant 0 : index
      %c2 = arith.constant 2 : index
      %c0_37 = arith.constant 0 : index
      %c0_38 = arith.constant 0 : index
      %78 = vector.load %arg4[%c0_36, %c2, %c0_37, %c0_38] : memref<1x4x8x128xf32, #tpu.memory_space<vmem>>, vector<1x1x8x128xf32>
      %79 = vector.shape_cast %78 : vector<1x1x8x128xf32> to vector<8x128xf32>
      %80 = vector.shape_cast %59 : vector<16x128xf32> to vector<2x8x128xf32>
      %cst_39 = arith.constant dense<0.000000e+00> : vector<8x128xf32>
      %81 = vector.multi_reduction <add>, %80, %cst_39 [0] : vector<2x8x128xf32> to vector<8x128xf32>
      %82 = arith.addf %79, %81 : vector<8x128xf32>
      %c0_40 = arith.constant 0 : index
      %c2_41 = arith.constant 2 : index
      %c0_42 = arith.constant 0 : index
      %c0_43 = arith.constant 0 : index
      %83 = vector.load %arg4[%c0_40, %c2_41, %c0_42, %c0_43] : memref<1x4x8x128xf32, #tpu.memory_space<vmem>>, vector<1x1x8x128xf32>
      %84 = vector.shape_cast %83 : vector<1x1x8x128xf32> to vector<8x128xf32>
      %85 = vector.shape_cast %82 : vector<8x128xf32> to vector<1x1x8x128xf32>
      tpu.vector_store %arg4[%c0_40, %c2_41, %c0_42, %c0_43], %85 {strides = array<i32>} : memref<1x4x8x128xf32, #tpu.memory_space<vmem>>, vector<1x1x8x128xf32>,
      %c0_44 = arith.constant 0 : index
      %c3 = arith.constant 3 : index
      %c0_45 = arith.constant 0 : index
      %c0_46 = arith.constant 0 : index
      %86 = vector.load %arg4[%c0_44, %c3, %c0_45, %c0_46] : memref<1x4x8x128xf32, #tpu.memory_space<vmem>>, vector<1x1x8x128xf32>
      %87 = vector.shape_cast %86 : vector<1x1x8x128xf32> to vector<8x128xf32>
      %88 = vector.shape_cast %60 : vector<16x128xf32> to vector<2x8x128xf32>
      %cst_47 = arith.constant dense<0.000000e+00> : vector<8x128xf32>
      %89 = vector.multi_reduction <add>, %88, %cst_47 [0] : vector<2x8x128xf32> to vector<8x128xf32>
      %90 = arith.addf %87, %89 : vector<8x128xf32>
      %c0_48 = arith.constant 0 : index
      %c3_49 = arith.constant 3 : index
      %c0_50 = arith.constant 0 : index
      %c0_51 = arith.constant 0 : index
      %91 = vector.load %arg4[%c0_48, %c3_49, %c0_50, %c0_51] : memref<1x4x8x128xf32, #tpu.memory_space<vmem>>, vector<1x1x8x128xf32>
      %92 = vector.shape_cast %91 : vector<1x1x8x128xf32> to vector<8x128xf32>
      %93 = vector.shape_cast %90 : vector<8x128xf32> to vector<1x1x8x128xf32>
      tpu.vector_store %arg4[%c0_48, %c3_49, %c0_50, %c0_51], %93 {strides = array<i32>} : memref<1x4x8x128xf32, #tpu.memory_space<vmem>>, vector<1x1x8x128xf32>,
    } else {
    }
    return
  }
  func.func @transform_0(%arg0: i32, %arg1: i32) -> (i32, i32) {
    %c1_i32 = arith.constant 1 : i32
    %0 = arith.muli %arg0, %c1_i32 : i32
    %1 = arith.addi %0, %arg1 : i32
    %c0_i32 = arith.constant 0 : i32
    %2 = arith.minsi %1, %c0_i32 : i32
    %c0_i32_0 = arith.constant 0 : i32
    %c0_i32_1 = arith.constant 0 : i32
    return %2, %c0_i32_0 : i32, i32
  }
  func.func @transform_1(%arg0: i32, %arg1: i32) -> (i32, i32) {
    %c1_i32 = arith.constant 1 : i32
    %0 = arith.muli %arg0, %c1_i32 : i32
    %1 = arith.addi %0, %arg1 : i32
    %c0_i32 = arith.constant 0 : i32
    %2 = arith.minsi %1, %c0_i32 : i32
    %c0_i32_0 = arith.constant 0 : i32
    %c0_i32_1 = arith.constant 0 : i32
    return %2, %c0_i32_0 : i32, i32
  }
  func.func @transform_2(%arg0: i32, %arg1: i32) -> (i32, i32, i32, i32) {
    %c0_i32 = arith.constant 0 : i32
    %c0_i32_0 = arith.constant 0 : i32
    %c0_i32_1 = arith.constant 0 : i32
    %c0_i32_2 = arith.constant 0 : i32
    return %arg0, %c0_i32, %c0_i32_0, %c0_i32_1 : i32, i32, i32, i32
  }
}

</mosaic_0001>

<llo_original>
// kernel: tpu_custom_call.1
$region0: #{tpu_custom_call.1}
  #allocation0 [shape = 'u32[]', space=smem, size = 0x4, offset = 0x4, fixed_abs, tag = 'smem constant byte address 0x4 - core index']
  #allocation1 [shape = 'u32[72,128]{1,0:T(1,128)}', space=vmem, size = 0x9000, scoped, tag = 'internal scratch']
  %s0 = inlined_call_operand.hbm [shape: f32[16,128], index: 0, kind: input, shape index: {}]
  %s1 = inlined_call_operand.hbm [shape: f32[16,128], index: 1, kind: input, shape index: {}]
  %s2 = inlined_call_operand.hbm [shape: f32[2,4,8,128], index: 2, kind: output, shape index: {}]
  %s3 = sld [smem:[#allocation0]]
  $region61: #{tpu_custom_call.1} parent=0
    _
  %s5 = ssub.s32 1, %s3
  %s6 = scalar_select 0, %s5, %s3
  $region1: #{tpu_custom_call.1} parent=0
    #allocation2 [shape = 'u8[16384]{0}', space=vmem, size = 0x4000, scoped, tag = 'input window, operand 0']
    #allocation3 [shape = 's32[2]{0}', space=sflag, size = 0x8, scoped, tag = 'scoped memory for tpu_custom_call.1']
    #allocation4 [shape = 's32[2]{0}', space=sflag, size = 0x8, scoped, tag = 'scoped memory for tpu_custom_call.1']
    #allocation5 [shape = 'u8[16384]{0}', space=vmem, size = 0x4000, scoped, tag = 'input window, operand 1']
    #allocation6 [shape = 's32[2]{0}', space=sflag, size = 0x8, scoped, tag = 'scoped memory for tpu_custom_call.1']
    #allocation7 [shape = 'u8[32768]{0}', space=vmem, size = 0x8000, scoped, tag = 'output window, operand 0']
    %7 = vsyncpa [#allocation3], 0
    %s8 = scalar_lea.sflag [#allocation3], 1
    %9 = vsyncpa %s8, 0
    %10 = vsyncpa [#allocation6], 0
    %s11 = scalar_lea.sflag [#allocation6], 1
    %12 = vsyncpa %s11, 0
    %13 = vsyncpa [#allocation4], 0
    %s14 = scalar_lea.sflag [#allocation4], 1
    %15 = vsyncpa %s14, 0
    loop: start=0, step=1, limit=4
    $region2: #{tpu_custom_call.1} parent=1 // loop_pre_header
      _
    $region3: #{tpu_custom_call.1} parent=1 // loop_header
      %s17 = sphi 0, %s21
      %p18 = scmp.ge.s32.totalorder %s17, 4
      %s24 = sphi 0, %s36
      %s25 = sphi 0, %s32
      %s26 = sphi 0, %s24
      %s27 = sphi 0, %s25
      %s28 = sphi 0, %s26
      %s29 = sphi 0, %s27
      %s45 = sphi 0, %s47
      %s48 = sphi 0, %s45
      %s49 = sphi 0, %s48
      %s65 = sphi 0, %s49
      %s77 = sphi 0, %s79
      %s80 = sphi 0, %s77
      %s81 = sphi 0, %s80
      %s97 = sphi 0, %s81
      %s103 = sphi 0, %s105
      %s106 = sphi 0, %s103
      %s107 = sphi 0, %s106
      %s123 = sphi 0, %s107
    $region4: #{tpu_custom_call.1} parent=1 // loop_header_branch
      %20 = sbr.rel (%p18) target = $region8
    $region5: #{tpu_custom_call.1} parent=1 // loop_body
      %s22 = ssub.s32 %s17, 1
      %s23 = ssub.s32 %s17, 2
      %s30 = sadd.s32 1, %s25
      %p31 = scmp.ge.s32.totalorder %s30, 1
      %s32 = scalar_select %p31, 0, %s30
      %s33 = sadd.s32 1, %s24
      %s34 = scalar_select %p31, %s33, %s24
      %p35 = scmp.ge.s32.totalorder %s34, 2
      %s36 = scalar_select %p35, 0, %s34
      %s37 = sadd.s32 %s24, %s25
      %p38 = scmp.lt.s32.totalorder %s37, 0
      %s39 = scalar_select %p38, %s37, 0
      %s40 = sadd.s32 %s36, %s32
      %p41 = scmp.lt.s32.totalorder %s40, 0
      %s42 = scalar_select %p41, %s40, 0
      %s43 = ssub.s32 %s39, %s42
      %p44 = scmp.eq.s32.totalorder %s43, 0
      %s46 = sadd.s32 %s45, 1
      %s47 = scalar_select %p44, %s45, %s46
      %p50 = pneg %p44
      %p51 = scmp.eq.s32.totalorder %s17, 1
      %p52 = por %p50, %p51
      %p53 = scmp.ne.s32.totalorder %s45, %s48
      %p54 = scmp.eq.s32.totalorder %s17, 0
      %p55 = por %p53, %p54
      %p56 = scmp.ne.s32.totalorder %s45, %s48
      %p57 = scmp.eq.s32.totalorder %s22, 1
      %p58 = por %p56, %p57
      %p59 = scmp.ne.s32.totalorder %s48, %s49
      %p60 = scmp.eq.s32.totalorder %s22, 0
      %p61 = por %p59, %p60
      %p62 = scmp.ne.s32.totalorder %s48, %s49
      %p63 = scmp.eq.s32.totalorder %s23, 1
      %p64 = por %p62, %p63
      %p66 = scmp.ne.s32.totalorder %s49, %s65
      %p67 = scmp.eq.s32.totalorder %s23, 0
      %p68 = por %p66, %p67
      %s69 = sadd.s32 %s24, %s25
      %p70 = scmp.lt.s32.totalorder %s69, 0
      %s71 = scalar_select %p70, %s69, 0
      %s72 = sadd.s32 %s36, %s32
      %p73 = scmp.lt.s32.totalorder %s72, 0
      %s74 = scalar_select %p73, %s72, 0
      %s75 = ssub.s32 %s71, %s74
      %p76 = scmp.eq.s32.totalorder %s75, 0
      %s78 = sadd.s32 %s77, 1
      %s79 = scalar_select %p76, %s77, %s78
      %p82 = pneg %p76
      %p83 = scmp.eq.s32.totalorder %s17, 1
      %p84 = por %p82, %p83
      %p85 = scmp.ne.s32.totalorder %s77, %s80
      %p86 = scmp.eq.s32.totalorder %s17, 0
      %p87 = por %p85, %p86
      %p88 = scmp.ne.s32.totalorder %s77, %s80
      %p89 = scmp.eq.s32.totalorder %s22, 1
      %p90 = por %p88, %p89
      %p91 = scmp.ne.s32.totalorder %s80, %s81
      %p92 = scmp.eq.s32.totalorder %s22, 0
      %p93 = por %p91, %p92
      %p94 = scmp.ne.s32.totalorder %s80, %s81
      %p95 = scmp.eq.s32.totalorder %s23, 1
      %p96 = por %p94, %p95
      %p98 = scmp.ne.s32.totalorder %s81, %s97
      %p99 = scmp.eq.s32.totalorder %s23, 0
      %p100 = por %p98, %p99
      %s101 = ssub.s32 %s24, %s36
      %p102 = scmp.eq.s32.totalorder %s101, 0
      %s104 = sadd.s32 %s103, 1
      %s105 = scalar_select %p102, %s103, %s104
      %p108 = pneg %p102
      %p109 = scmp.eq.s32.totalorder %s17, 1
      %p110 = por %p108, %p109
      %p111 = scmp.ne.s32.totalorder %s103, %s106
      %p112 = scmp.eq.s32.totalorder %s17, 0
      %p113 = por %p111, %p112
      %p114 = scmp.ne.s32.totalorder %s103, %s106
      %p115 = scmp.eq.s32.totalorder %s22, 1
      %p116 = por %p114, %p115
      %p117 = scmp.ne.s32.totalorder %s106, %s107
      %p118 = scmp.eq.s32.totalorder %s22, 0
      %p119 = por %p117, %p118
      %p120 = scmp.ne.s32.totalorder %s106, %s107
      %p121 = scmp.eq.s32.totalorder %s23, 1
      %p122 = por %p120, %p121
      %p124 = scmp.ne.s32.totalorder %s107, %s123
      %p125 = scmp.eq.s32.totalorder %s23, 0
      %p126 = por %p124, %p125
      %p127 = scmp.le.s32.totalorder 1, %s17
      %p128 = scmp.lt.s32.totalorder %s17, 3
      %p129 = pnand %p127, %p128
      %p130 = pneg %p129
      // Predicated region
      $region9: #{tpu_custom_call.1} parent=5 // pred_check
        _
      $region10: #{tpu_custom_call.1} parent=5 // pred_check_branch
        %132 = sbr.rel (%p129) target = $region12
      $region11: #{tpu_custom_call.1} parent=5 // pred_region
        %s133 = ssub.s32 %s17, 1
      $region12: #{tpu_custom_call.1} parent=5 // pred_fallthru
        _
      %p134 = scmp.lt.s32.totalorder %s17, 2
      // Predicated region
      $region13: #{tpu_custom_call.1} parent=5 // pred_check
        %p135 = pneg %p134
      $region14: #{tpu_custom_call.1} parent=5 // pred_check_branch
        %137 = sbr.rel (%p135) target = $region16
      $region15: #{tpu_custom_call.1} parent=5 // pred_region
        // Predicated region
        $region17: #{tpu_custom_call.1} parent=15 // pred_check
          %p138 = pneg %p55
        $region18: #{tpu_custom_call.1} parent=15 // pred_check_branch
          %140 = sbr.rel (%p138) target = $region20
        $region19: #{tpu_custom_call.1} parent=15 // pred_region
          %s141 = sand.u32 %s45, 1
          %s142 = scalar_lea.sflag [#allocation3], %s141
          %s143 = sand.u32 %s45, 1
          %s144 = smul.addr %s143, 16
          %s145 = scalar_lea.vmem [#allocation2], %s144
          %s146 = sadd.s32 %s24, %s25
          %p147 = scmp.lt.s32.totalorder %s146, 0
          %s148 = scalar_select %p147, %s146, 0
          %s149 = smul.u32 2, %s148
          %151 = vsyncadd %s142, 0
          %s152 = smul.addr %s149, 8
          %s153 = scalar_lea.hbm %s0, %s152
          %s154 = sshll.u32 %s153, 4
          %s155 = int_to_ptr.hbm [resolvable:$true] %s154
          %s156 = sshll.u32 %s145, 4
          %s157 = int_to_ptr.vmem [resolvable:$true] %s156
          %162 = dma.hbm_to_vmem [thread:$0]  %s155, 256, %s157, %s142, 128, 128, 8
        $region20: #{tpu_custom_call.1} parent=15 // pred_fallthru
          _
        // Predicated region
        $region21: #{tpu_custom_call.1} parent=15 // pred_check
          %p163 = pneg %p87
        $region22: #{tpu_custom_call.1} parent=15 // pred_check_branch
          %165 = sbr.rel (%p163) target = $region24
        $region23: #{tpu_custom_call.1} parent=15 // pred_region
          %s166 = sand.u32 %s77, 1
          %s167 = scalar_lea.sflag [#allocation6], %s166
          %s168 = sand.u32 %s77, 1
          %s169 = smul.addr %s168, 16
          %s170 = scalar_lea.vmem [#allocation5], %s169
          %s171 = sadd.s32 %s24, %s25
          %p172 = scmp.lt.s32.totalorder %s171, 0
          %s173 = scalar_select %p172, %s171, 0
          %s174 = smul.u32 2, %s173
          %176 = vsyncadd %s167, 0
          %s177 = smul.addr %s174, 8
          %s178 = scalar_lea.hbm %s1, %s177
          %s179 = sshll.u32 %s178, 4
          %s180 = int_to_ptr.hbm [resolvable:$true] %s179
          %s181 = sshll.u32 %s170, 4
          %s182 = int_to_ptr.vmem [resolvable:$true] %s181
          %187 = dma.hbm_to_vmem [thread:$0]  %s180, 256, %s182, %s167, 128, 128, 8
        $region24: #{tpu_custom_call.1} parent=15 // pred_fallthru
          _
      $region16: #{tpu_custom_call.1} parent=5 // pred_fallthru
        _
      %p188 = scmp.le.s32.totalorder 1, %s17
      %p189 = scmp.lt.s32.totalorder %s17, 3
      %p190 = pnand %p188, %p189
      %p191 = pneg %p190
      // Predicated region
      $region25: #{tpu_custom_call.1} parent=5 // pred_check
        _
      $region26: #{tpu_custom_call.1} parent=5 // pred_check_branch
        %193 = sbr.rel (%p190) target = $region28
      $region27: #{tpu_custom_call.1} parent=5 // pred_region
        %s194 = ssub.s32 %s17, 1
        %s195 = sand.u32 %s48, 1
        %s196 = scalar_lea.sflag [#allocation3], %s195
        %s197 = sand.u32 %s48, 1
        %s198 = smul.addr %s197, 16
        %s199 = scalar_lea.vmem [#allocation2], %s198
        // Predicated region
        $region29: #{tpu_custom_call.1} parent=27 // pred_check
          %p200 = pneg %p61
        $region30: #{tpu_custom_call.1} parent=27 // pred_check_branch
          %202 = sbr.rel (%p200) target = $region32
        $region31: #{tpu_custom_call.1} parent=27 // pred_region
          %204 = dma.done %s196, 256
        $region32: #{tpu_custom_call.1} parent=27 // pred_fallthru
          _
        %s205 = sand.u32 %s80, 1
        %s206 = scalar_lea.sflag [#allocation6], %s205
        %s207 = sand.u32 %s80, 1
        %s208 = smul.addr %s207, 16
        %s209 = scalar_lea.vmem [#allocation5], %s208
        // Predicated region
        $region33: #{tpu_custom_call.1} parent=27 // pred_check
          %p210 = pneg %p93
        $region34: #{tpu_custom_call.1} parent=27 // pred_check_branch
          %212 = sbr.rel (%p210) target = $region36
        $region35: #{tpu_custom_call.1} parent=27 // pred_region
          %214 = dma.done %s206, 256
        $region36: #{tpu_custom_call.1} parent=27 // pred_fallthru
          _
        %s215 = sand.u32 %s48, 1
        %s216 = scalar_lea.sflag [#allocation3], %s215
        %s217 = sand.u32 %s48, 1
        %s218 = smul.addr %s217, 16
        %s219 = scalar_lea.vmem [#allocation2], %s218
        %p220 = pneg %p61
        %p221 = pneg %p58
        %s222 = sand.u32 %s80, 1
        %s223 = scalar_lea.sflag [#allocation6], %s222
        %s224 = sand.u32 %s80, 1
        %s225 = smul.addr %s224, 16
        %s226 = scalar_lea.vmem [#allocation5], %s225
        %p227 = pneg %p93
        %p228 = pneg %p90
        %p229 = pneg %p119
        %p230 = pneg %p116
        %s231 = sand.u32 %s106, 1
        %s232 = scalar_lea.sflag [#allocation4], %s231
        %s233 = sand.u32 %s106, 1
        %s234 = smul.addr %s233, 32
        %s235 = scalar_lea.vmem [#allocation7], %s234
        %s236 = sadd.s32 %s26, %s27
        %p237 = scmp.lt.s32.totalorder %s236, 0
        %s238 = scalar_select %p237, %s236, 0
        %s239 = smul.u32 2, %s238
        %s240 = sadd.s32 %s26, %s27
        %p241 = scmp.lt.s32.totalorder %s240, 0
        %s242 = scalar_select %p241, %s240, 0
        %s243 = smul.u32 2, %s242
        %s244 = sadd.s32 %s26, %s27
        %p245 = scmp.eq.s32.totalorder %s27, 0
        // Predicated region
        $region37: #{tpu_custom_call.1} parent=27 // pred_check
          %p246 = pneg %p245
        $region38: #{tpu_custom_call.1} parent=27 // pred_check_branch
          %248 = sbr.rel (%p246) target = $region40
        $region39: #{tpu_custom_call.1} parent=27 // pred_region
          %249 = vst [vmem:[%s235] sm:$0xff] 0.0
          %250 = vst [vmem:[%s235 + $0x8] sm:$0xff] 0.0
          %251 = vst [vmem:[%s235 + $0x10] sm:$0xff] 0.0
          %252 = vst [vmem:[%s235 + $0x18] sm:$0xff] 0.0
        $region40: #{tpu_custom_call.1} parent=27 // pred_fallthru
          _
        %v253 = vld [vmem:[%s199] sm:$0xff]
        %v254 = vld [vmem:[%s199 + $0x8] sm:$0xff]
        %v255 = vld [vmem:[%s209] sm:$0xff]
        %v256 = vld [vmem:[%s209 + $0x8] sm:$0xff]
        %v257 = vand.u32 2147483647, %v253
        %v258 = vand.u32 2147483647, %v254
        %v259 = vsub.f32 0.0, %v257
        %v260 = vsub.f32 0.0, %v258
        %v261 = vmul.f32 %v259, 1.442695
        %v262 = vpow.pop %v261
        %v263 = vmul.f32 %v260, 1.442695
        %v264 = vpow.pop %v263
        %v265 = vadd.f32 %v262, 1.0
        %v266 = vlog2.pop %v265
        %v267 = vmul.f32 %v266, 0.6931472
        %v268 = vmul.f32 -0.5, %v262
        %v269 = vadd.f32 %v268, 1.0
        %v270 = vmul.f32 %v269, %v262
        %v271 = vand.u32 2147483647, %v262
        %vm272 = vcmp.lt.f32.partialorder %v271, 0.0004427343
        %v273 = vsel %vm272, %v270, %v267
        %v274 = vadd.f32 %v264, 1.0
        %v275 = vlog2.pop %v274
        %v276 = vmul.f32 %v275, 0.6931472
        %v277 = vmul.f32 -0.5, %v264
        %v278 = vadd.f32 %v277, 1.0
        %v279 = vmul.f32 %v278, %v264
        %v280 = vand.u32 2147483647, %v264
        %vm281 = vcmp.lt.f32.partialorder %v280, 0.0004427343
        %v282 = vsel %vm281, %v279, %v276
        %v283 = vsub.f32 0.0, %v253
        %v284 = vsub.f32 0.0, %v254
        %v285 = vmax.f32 %v283, 0.0
        %v286 = vmax.f32 %v284, 0.0
        %v287 = vadd.f32 %v273, %v285
        %v288 = vadd.f32 %v282, %v286
        %v289 = vsub.f32 0.0, %v287
        %v290 = vsub.f32 0.0, %v288
        %v291 = vmax.f32 %v289, -100.0
        %v292 = vmax.f32 %v290, -100.0
        %v293 = vadd.f32 %v253, %v287
        %v294 = vadd.f32 %v254, %v288
        %v295 = vsub.f32 0.0, %v293
        %v296 = vsub.f32 0.0, %v294
        %v297 = vmax.f32 %v295, -100.0
        %v298 = vmax.f32 %v296, -100.0
        %vm299 = vcmp.ge.f32.partialorder %v253, 0.0
        %vm300 = vcmp.ge.f32.partialorder %v254, 0.0
        %v301 = vsel %vm299, 1.0, %v262
        %v302 = vsel %vm300, 1.0, %v264
        %v303 = vadd.f32 %v262, 1.0
        %v304 = vadd.f32 %v264, 1.0
        %v305 = vrcp.pop %v303
        %v306 = vrcp.pop %v304
        %v307 = vmul.f32 %v301, %v305
        %v308 = vmul.f32 %v302, %v306
        %v309 = vmul.f32 %v255, %v291
        %v310 = vmul.f32 %v256, %v292
        %v311 = vsub.f32 1.0, %v255
        %v312 = vsub.f32 1.0, %v256
        %v313 = vmul.f32 %v311, %v297
        %v314 = vmul.f32 %v312, %v298
        %v315 = vadd.f32 %v309, %v313
        %v316 = vadd.f32 %v310, %v314
        %v317 = vsub.f32 0.0, %v315
        %v318 = vsub.f32 0.0, %v316
        %p319 = scmp.ge.s32.totalorder %s244, 0
        %p320 = scmp.lt.s32.totalorder %s244, 0
        // Predicated region
        $region41: #{tpu_custom_call.1} parent=27 // pred_check
          %p321 = pneg %p320
        $region42: #{tpu_custom_call.1} parent=27 // pred_check_branch
          %323 = sbr.rel (%p321) target = $region44
        $region43: #{tpu_custom_call.1} parent=27 // pred_region
          %v324 = vld [vmem:[%s235] sm:$0xff]
          %v325 = vmul.f32 %v307, %v255
          %v326 = vmul.f32 %v308, %v256
          %v327 = vadd.f32 %v325, %v326
          %v328 = vadd.f32 %v324, %v327
          %329 = vst [vmem:[%s235] sm:$0xff] %v328
          %s330 = scalar_lea.vmem %s235, 8 [#allocation7]
          %v331 = vld [vmem:[%s330] sm:$0xff]
          %v332 = vadd.f32 %v307, %v308
          %v333 = vadd.f32 %v331, %v332
          %334 = vst [vmem:[%s330] sm:$0xff] %v333
          %s335 = scalar_lea.vmem %s235, 16 [#allocation7]
          %v336 = vld [vmem:[%s335] sm:$0xff]
          %v337 = vadd.f32 %v255, %v256
          %v338 = vadd.f32 %v336, %v337
          %339 = vst [vmem:[%s335] sm:$0xff] %v338
          %s340 = scalar_lea.vmem %s235, 24 [#allocation7]
          %v341 = vld [vmem:[%s340] sm:$0xff]
          %v342 = vadd.f32 %v317, %v318
          %v343 = vadd.f32 %v341, %v342
          %344 = vst [vmem:[%s340] sm:$0xff] %v343
        $region44: #{tpu_custom_call.1} parent=27 // pred_fallthru
          _
        // Predicated region
        $region45: #{tpu_custom_call.1} parent=27 // pred_check
          %p345 = pneg %p319
        $region46: #{tpu_custom_call.1} parent=27 // pred_check_branch
          %347 = sbr.rel (%p345) target = $region48
        $region47: #{tpu_custom_call.1} parent=27 // pred_region
          %v348 = vlaneseq
          %v349 = vshrl.u32 %v348, 7
          %v350 = vadd.s32 %v349, 8
          %s351 = smul.u32 %s244, 16
          %v352 = vstv %s351
          %v353 = vadd.s32 %v349, %v352
          %v354 = vadd.s32 %v350, %v352
          %v355 = vlaneseq
          %v356 = vand.u32 %v355, 127
          %v357 = vmul.u32 %v353, 128
          %v358 = vmul.u32 %v354, 128
          %v359 = vadd.s32 %v357, %v356
          %v360 = vadd.s32 %v358, %v356
          %vm361 = vcmp.lt.s32.totalorder %v359, 2048
          %vm362 = vcmp.lt.s32.totalorder %v360, 2048
          %v363 = vsel %vm361, %v307, 0.0
          %v364 = vsel %vm362, %v308, 0.0
          %v365 = vsel %vm361, %v255, 0.0
          %v366 = vsel %vm362, %v256, 0.0
          %v367 = vsel %vm361, %v317, 0.0
          %v368 = vsel %vm362, %v318, 0.0
          %v369 = vld [vmem:[%s235] sm:$0xff]
          %v370 = vmul.f32 %v363, %v365
          %v371 = vmul.f32 %v364, %v366
          %v372 = vadd.f32 %v370, %v371
          %v373 = vadd.f32 %v369, %v372
          %374 = vst [vmem:[%s235] sm:$0xff] %v373
          %s375 = scalar_lea.vmem %s235, 8 [#allocation7]
          %v376 = vld [vmem:[%s375] sm:$0xff]
          %v377 = vadd.f32 %v363, %v364
          %v378 = vadd.f32 %v376, %v377
          %379 = vst [vmem:[%s375] sm:$0xff] %v378
          %s380 = scalar_lea.vmem %s235, 16 [#allocation7]
          %v381 = vld [vmem:[%s380] sm:$0xff]
          %v382 = vadd.f32 %v365, %v366
          %v383 = vadd.f32 %v381, %v382
          %384 = vst [vmem:[%s380] sm:$0xff] %v383
          %s385 = scalar_lea.vmem %s235, 24 [#allocation7]
          %v386 = vld [vmem:[%s385] sm:$0xff]
          %v387 = vadd.f32 %v367, %v368
          %v388 = vadd.f32 %v386, %v387
          %389 = vst [vmem:[%s385] sm:$0xff] %v388
        $region48: #{tpu_custom_call.1} parent=27 // pred_fallthru
          _
        %s390 = sand.u32 %s106, 1
        %s391 = scalar_lea.sflag [#allocation4], %s390
        %s392 = sand.u32 %s106, 1
        %s393 = smul.addr %s392, 32
        %s394 = scalar_lea.vmem [#allocation7], %s393
        // Predicated region
        $region49: #{tpu_custom_call.1} parent=27 // pred_check
          %p395 = pneg %p116
        $region50: #{tpu_custom_call.1} parent=27 // pred_check_branch
          %397 = sbr.rel (%p395) target = $region52
        $region51: #{tpu_custom_call.1} parent=27 // pred_region
          %399 = vsyncadd %s391, 0
          %s400 = smul.addr %s26, 4
          %s401 = smul.addr %s400, 8
          %s402 = scalar_lea.hbm %s2, %s401
          %s403 = sshll.u32 %s394, 4
          %s404 = int_to_ptr.vmem [resolvable:$true] %s403
          %s405 = sshll.u32 %s402, 4
          %s406 = int_to_ptr.hbm [resolvable:$true] %s405
          %411 = dma.vmem_to_hbm [thread:$0]  %s404, 512, %s406, %s391, 128, 128, 8
        $region52: #{tpu_custom_call.1} parent=27 // pred_fallthru
          _
      $region28: #{tpu_custom_call.1} parent=5 // pred_fallthru
        _
      %p412 = scmp.le.s32.totalorder 2, %s17
      // Predicated region
      $region53: #{tpu_custom_call.1} parent=5 // pred_check
        %p413 = pneg %p412
      $region54: #{tpu_custom_call.1} parent=5 // pred_check_branch
        %415 = sbr.rel (%p413) target = $region56
      $region55: #{tpu_custom_call.1} parent=5 // pred_region
        %s416 = ssub.s32 %s17, 2
        // Predicated region
        $region57: #{tpu_custom_call.1} parent=55 // pred_check
          %p417 = pneg %p122
        $region58: #{tpu_custom_call.1} parent=55 // pred_check_branch
          %419 = sbr.rel (%p417) target = $region60
        $region59: #{tpu_custom_call.1} parent=55 // pred_region
          %s420 = sand.u32 %s107, 1
          %s421 = scalar_lea.sflag [#allocation4], %s420
          %s422 = sand.u32 %s107, 1
          %s423 = smul.addr %s422, 32
          %s424 = scalar_lea.vmem [#allocation7], %s423
          %426 = dma.done %s421, 512
        $region60: #{tpu_custom_call.1} parent=55 // pred_fallthru
          _
      $region56: #{tpu_custom_call.1} parent=5 // pred_fallthru
        _
    $region6: #{tpu_custom_call.1} parent=1 // loop_footer
      %s21 = sadd.s32 1, %s17
    $region7: #{tpu_custom_call.1} parent=1 // loop_footer_branch
      %16 = sbr.rel target = $region3
    $region8: #{tpu_custom_call.1} parent=1 // loop_exit
      _
    %427 = vsyncpa [#allocation3], 1
    %s428 = scalar_lea.sflag [#allocation3], 1
    %429 = vsyncpa %s428, 1
    %430 = vsyncpa [#allocation6], 1
    %s431 = scalar_lea.sflag [#allocation6], 1
    %432 = vsyncpa %s431, 1
    %433 = vsyncpa [#allocation4], 1
    %s434 = scalar_lea.sflag [#allocation4], 1
    %435 = vsyncpa %s434, 1

</llo_original>
